<compile_context>
chip_gen: v7x
topology: tpu7x:2x2x1
jax: 0.10.0
libtpu: 0.0.40
codegen_flags: <defaults>
</compile_context>

<pallas_src>
import jax
import jax.numpy as jnp
from jax.experimental import pallas as pl
from jax.experimental.pallas import tpu as pltpu


# ---------------------------------------------------------------------------
# Pallas kernel: local 1x1-conv branch (2 folded conv+BN layers, ReLU between)
# + add broadcast global term (b2 pre-folded) + sigmoid.
# x block: (1, C, TN) f32, N on lanes. Output block: (1, C, TN) out_dtype.
# ---------------------------------------------------------------------------
def _ms_cam_la_kernel(x_ref, xg_ref, w1_ref, b1_ref, w2_ref, o_ref):
    x = x_ref[0].astype(jnp.bfloat16)                                 # (C, TN)
    # conv1 (C -> Ci) + folded BN + ReLU   (f32 MXU accumulation)
    h = jnp.dot(w1_ref[...], x, preferred_element_type=jnp.float32)   # (Ci, TN)
    h = jnp.maximum(h + b1_ref[...], 0.0)
    # conv2 (Ci -> C) + folded BN (bias folded into xg in the wrapper)
    xl = jnp.dot(w2_ref[...], h.astype(jnp.bfloat16),
                 preferred_element_type=jnp.float32)                  # (C, TN)
    # add global branch (column broadcast over lanes) + sigmoid
    xlg = xl + xg_ref[0]                                              # (C,1)->(C,TN)
    wei = pl.reciprocal(1.0 + jnp.exp(-xlg), approx=True)
    o_ref[0] = wei.astype(o_ref.dtype)


def _choose_tile_n(B, N, tile_n):
    """Largest legal N-tile: multiple of 128 (or == N), divides N, and keeps
    >= 2 grid steps when possible (v7x has 2 TensorCores)."""
    if tile_n >= N:
        tn = N
    else:
        cand = [d for d in range(128, tile_n + 1, 128) if N % d == 0]
        tn = max(cand) if cand else N
    if B * (N // tn) < 2:                       # v7x: don't starve the 2nd TC
        half = N // 2
        if N % 2 == 0 and half % 128 == 0:
            tn = half
    return tn


def ms_cam_la_forward(params, xa, *, tile_n=2048, out_dtype=jnp.bfloat16):
    """xa: (B, C, N) float32  ->  wei: (B, C, N) out_dtype (default bf16)."""
    B, C, N = xa.shape
    Ci = params['w1'].shape[0]

    # ---- global branch (tiny: O(B*C*C/r); plain JAX, f32) ------------------
    m = jnp.mean(xa, axis=2, dtype=jnp.float32)                            # (B, C)
    hg = jnp.maximum(
        jnp.einsum('ic,bc->bi', params['gw1'], m) + params['gb1'][None, :], 0.0)
    xg = jnp.einsum('ci,bi->bc', params['gw2'], hg) + params['gb2'][None, :]
    # fold the local-branch conv2 bias (per-channel column) into xg
    xg = xg + params['b2'][None, :, 0]
    xg = xg[:, :, None].astype(jnp.float32)                                # (B, C, 1)

    # ---- tile choice --------------------------------------------------------
    tn = _choose_tile_n(B, N, tile_n)
    assert N % tn == 0, (N, tn)
    assert (tn % 128 == 0) or (tn == N), "tile_n must be a multiple of 128 or == N"

    w1 = params['w1'].astype(jnp.bfloat16)                                 # (Ci, C)
    w2 = params['w2'].astype(jnp.bfloat16)                                 # (C, Ci)
    b1 = params['b1']                                                      # (Ci, 1) f32

    grid = (B, N // tn)
    return pl.pallas_call(
        _ms_cam_la_kernel,
        out_shape=jax.ShapeDtypeStruct((B, C, N), out_dtype),
        grid_spec=pltpu.PrefetchScalarGridSpec(
            num_scalar_prefetch=0,
            grid=grid,
            in_specs=[
                pl.BlockSpec((1, C, tn), lambda b, n: (b, 0, n)),
                pl.BlockSpec((1, C, 1), lambda b, n: (b, 0, 0)),
                pl.BlockSpec((Ci, C), lambda b, n: (0, 0)),
                pl.BlockSpec((Ci, 1), lambda b, n: (0, 0)),
                pl.BlockSpec((C, Ci), lambda b, n: (0, 0)),
            ],
            out_specs=pl.BlockSpec((1, C, tn), lambda b, n: (b, 0, n)),
        ),
        compiler_params=pltpu.CompilerParams(
            dimension_semantics=("parallel", "parallel")),
    )(xa, xg, w1, b1, w2)


# ---------------------------------------------------------------------------
# Parameters (deterministic). Conv bias + BatchNorm folded (eval mode).
# TODO(synk): training-mode BatchNorm (batch statistics) is not computed here.
# ---------------------------------------------------------------------------
def _conv_bn_fold(keys, cout, cin, eps=1e-5):
    kw, kb, kg, kbeta, km, kv = keys
    w = jax.random.normal(kw, (cout, cin), jnp.float32) / jnp.sqrt(cin)
    b = 0.1 * jax.random.normal(kb, (cout,), jnp.float32)
    g = 1.0 + 0.1 * jax.random.normal(kg, (cout,), jnp.float32)
    beta = 0.1 * jax.random.normal(kbeta, (cout,), jnp.float32)
    mu = 0.05 * jax.random.normal(km, (cout,), jnp.float32)
    var = 1.0 + 0.1 * jnp.abs(jax.random.normal(kv, (cout,), jnp.float32))
    s = g / jnp.sqrt(var + eps)
    return w * s[:, None], (b - mu) * s + beta


def init_params(key, channels=64, r=4, eps=1e-5):
    ci = channels // r
    ks = jax.random.split(key, 24)
    w1, b1 = _conv_bn_fold(ks[0:6], ci, channels, eps)       # local branch
    w2, b2 = _conv_bn_fold(ks[6:12], channels, ci, eps)
    gw1, gb1 = _conv_bn_fold(ks[12:18], ci, channels, eps)   # global branch
    gw2, gb2 = _conv_bn_fold(ks[18:24], channels, ci, eps)
    return {
        'w1': w1, 'b1': b1[:, None],
        'w2': w2, 'b2': b2[:, None],
        'gw1': gw1, 'gb1': gb1,
        'gw2': gw2, 'gb2': gb2,
    }


# ---------------------------------------------------------------------------
# Pure-JAX f32 reference of the same forward (for validation).
# ---------------------------------------------------------------------------
def ref_forward(params, xa):
    h = jnp.maximum(
        jnp.einsum('ic,bcn->bin', params['w1'], xa) + params['b1'][None, :, :], 0.0)
    xl = jnp.einsum('ci,bin->bcn', params['w2'], h) + params['b2'][None, :, :]
    m = jnp.mean(xa, axis=2)
    hg = jnp.maximum(
        jnp.einsum('ic,bc->bi', params['gw1'], m) + params['gb1'][None, :], 0.0)
    xg = jnp.einsum('ci,bi->bc', params['gw2'], hg) + params['gb2'][None, :]
    return jax.nn.sigmoid(xl + xg[:, :, None])


if __name__ == "__main__":
    key = jax.random.PRNGKey(0)
    B, C, r, N = 2, 64, 4, 256          # channels=64, r=4 are the module defaults

    kx, kp = jax.random.split(key)
    xa = jax.random.normal(kx, (B, C, N), jnp.float32)
    params = init_params(kp, channels=C, r=r)

    # default tile_n=2048 -> tn collapses to N=256 here; grid = (2, 1) -> 2 steps
    out = ms_cam_la_forward(params, xa)
    out = jax.block_until_ready(out)
    assert out.shape == (B, C, N), out.shape
    assert out.dtype == jnp.bfloat16, out.dtype

    ref = ref_forward(params, xa)
    max_err = float(jnp.max(jnp.abs(out.astype(jnp.float32) - ref)))
    # bf16 matmul inputs + bf16 output + approx reciprocal vs f32 reference:
    # wei is in (0,1), so absolute error stays well inside 2e-2
    assert jnp.allclose(out.astype(jnp.float32), ref, rtol=2e-2, atol=2e-2), max_err

    print("KERNEL_OK")
</pallas_src>

<mosaic_0001>
module attributes {stable_mosaic.version = 11 : i64} {
  func.func @_ms_cam_la_kernel(%arg0: i32, %arg1: i32, %arg2: memref<1x64x256xf32, #tpu.memory_space<vmem>>, %arg3: memref<1x64x1xf32, #tpu.memory_space<vmem>>, %arg4: memref<16x64xbf16, #tpu.memory_space<vmem>>, %arg5: memref<16x1xf32, #tpu.memory_space<vmem>>, %arg6: memref<64x16xbf16, #tpu.memory_space<vmem>>, %arg7: memref<1x64x256xbf16, #tpu.memory_space<vmem>>) attributes {dimension_semantics = [#tpu.dimension_semantics<parallel>, #tpu.dimension_semantics<parallel>], iteration_bounds = array<i64: 2, 1>, scalar_prefetch = 0 : i64, scratch_operands = 0 : i64, tpu.core_type = #tpu.core_type<tc>, window_params = [{transform_indices = @transform_0, window_bounds = array<i64: 1, 64, 256>}, {transform_indices = @transform_1, window_bounds = array<i64: 1, 64, 1>}, {pipeline_mode = #tpu.pipeline_mode<synchronous>, transform_indices = @transform_2, window_bounds = array<i64: 16, 64>}, {pipeline_mode = #tpu.pipeline_mode<synchronous>, transform_indices = @transform_3, window_bounds = array<i64: 16, 1>}, {pipeline_mode = #tpu.pipeline_mode<synchronous>, transform_indices = @transform_4, window_bounds = array<i64: 64, 16>}, {transform_indices = @transform_5, window_bounds = array<i64: 1, 64, 256>}]} {
    %c0 = arith.constant 0 : index
    %c0_0 = arith.constant 0 : index
    %c0_1 = arith.constant 0 : index
    %0 = vector.load %arg2[%c0, %c0_0, %c0_1] : memref<1x64x256xf32, #tpu.memory_space<vmem>>, vector<1x64x256xf32>
    %1 = vector.shape_cast %0 : vector<1x64x256xf32> to vector<64x256xf32>
    %2 = arith.truncf %1 : vector<64x256xf32> to vector<64x256xbf16>
    %c0_2 = arith.constant 0 : index
    %c0_3 = arith.constant 0 : index
    %3 = vector.load %arg4[%c0_2, %c0_3] : memref<16x64xbf16, #tpu.memory_space<vmem>>, vector<16x64xbf16>
    %cst = arith.constant dense<0.000000e+00> : vector<16x256xf32>
    %4 = tpu.matmul %3, %2, %cst {dimension_numbers = #tpu.dot_dimension_numbers<[1], [0], [0], [1], [0, 0, 1, 1], [], []>} : vector<16x64xbf16>, vector<64x256xbf16>, vector<16x256xf32> -> vector<16x256xf32>
    %c0_4 = arith.constant 0 : index
    %c0_5 = arith.constant 0 : index
    %5 = vector.load %arg5[%c0_4, %c0_5] : memref<16x1xf32, #tpu.memory_space<vmem>>, vector<16x1xf32>
    %6 = vector.broadcast %5 : vector<16x1xf32> to vector<16x256xf32>
    %7 = arith.addf %4, %6 : vector<16x256xf32>
    %cst_6 = arith.constant 0.000000e+00 : f32
    %8 = vector.broadcast %cst_6 : f32 to vector<16x256xf32>
    %9 = arith.maximumf %7, %8 : vector<16x256xf32>
    %c0_7 = arith.constant 0 : index
    %c0_8 = arith.constant 0 : index
    %10 = vector.load %arg6[%c0_7, %c0_8] : memref<64x16xbf16, #tpu.memory_space<vmem>>, vector<64x16xbf16>
    %11 = arith.truncf %9 : vector<16x256xf32> to vector<16x256xbf16>
    %cst_9 = arith.constant dense<0.000000e+00> : vector<64x256xf32>
    %12 = tpu.matmul %10, %11, %cst_9 {dimension_numbers = #tpu.dot_dimension_numbers<[1], [0], [0], [1], [0, 0, 1, 1], [], []>} : vector<64x16xbf16>, vector<16x256xbf16>, vector<64x256xf32> -> vector<64x256xf32>
    %c0_10 = arith.constant 0 : index
    %c0_11 = arith.constant 0 : index
    %c0_12 = arith.constant 0 : index
    %13 = vector.load %arg3[%c0_10, %c0_11, %c0_12] : memref<1x64x1xf32, #tpu.memory_space<vmem>>, vector<1x64x1xf32>
    %14 = vector.shape_cast %13 : vector<1x64x1xf32> to vector<64x1xf32>
    %15 = vector.broadcast %14 : vector<64x1xf32> to vector<64x256xf32>
    %16 = arith.addf %12, %15 : vector<64x256xf32>
    %cst_13 = arith.constant 0.000000e+00 : f32
    %17 = vector.broadcast %cst_13 : f32 to vector<64x256xf32>
    %18 = arith.subf %17, %16 : vector<64x256xf32>
    %19 = math.exp %18 : vector<64x256xf32>
    %cst_14 = arith.constant 1.000000e+00 : f32
    %20 = vector.broadcast %cst_14 : f32 to vector<64x256xf32>
    %21 = arith.addf %20, %19 : vector<64x256xf32>
    %22 = tpu.reciprocal %21 {approx = true} : vector<64x256xf32> -> vector<64x256xf32>
    %23 = arith.truncf %22 : vector<64x256xf32> to vector<64x256xbf16>
    %c0_15 = arith.constant 0 : index
    %c0_16 = arith.constant 0 : index
    %c0_17 = arith.constant 0 : index
    %24 = vector.load %arg7[%c0_15, %c0_16, %c0_17] : memref<1x64x256xbf16, #tpu.memory_space<vmem>>, vector<1x64x256xbf16>
    %25 = vector.shape_cast %24 : vector<1x64x256xbf16> to vector<64x256xbf16>
    %26 = vector.shape_cast %23 : vector<64x256xbf16> to vector<1x64x256xbf16>
    tpu.vector_store %arg7[%c0_15, %c0_16, %c0_17], %26 {strides = array<i32>} : memref<1x64x256xbf16, #tpu.memory_space<vmem>>, vector<1x64x256xbf16>,
    return
  }
  func.func @transform_0(%arg0: i32, %arg1: i32) -> (i32, i32, i32) {
    %c0_i32 = arith.constant 0 : i32
    %c0_i32_0 = arith.constant 0 : i32
    return %arg0, %c0_i32, %arg1 : i32, i32, i32
  }
  func.func @transform_1(%arg0: i32, %arg1: i32) -> (i32, i32, i32) {
    %c0_i32 = arith.constant 0 : i32
    %c0_i32_0 = arith.constant 0 : i32
    %c0_i32_1 = arith.constant 0 : i32
    return %arg0, %c0_i32, %c0_i32_0 : i32, i32, i32
  }
  func.func @transform_2(%arg0: i32, %arg1: i32) -> (i32, i32) {
    %c0_i32 = arith.constant 0 : i32
    %c0_i32_0 = arith.constant 0 : i32
    %c0_i32_1 = arith.constant 0 : i32
    return %c0_i32, %c0_i32_0 : i32, i32
  }
  func.func @transform_3(%arg0: i32, %arg1: i32) -> (i32, i32) {
    %c0_i32 = arith.constant 0 : i32
    %c0_i32_0 = arith.constant 0 : i32
    %c0_i32_1 = arith.constant 0 : i32
    return %c0_i32, %c0_i32_0 : i32, i32
  }
  func.func @transform_4(%arg0: i32, %arg1: i32) -> (i32, i32) {
    %c0_i32 = arith.constant 0 : i32
    %c0_i32_0 = arith.constant 0 : i32
    %c0_i32_1 = arith.constant 0 : i32
    return %c0_i32, %c0_i32_0 : i32, i32
  }
  func.func @transform_5(%arg0: i32, %arg1: i32) -> (i32, i32, i32) {
    %c0_i32 = arith.constant 0 : i32
    %c0_i32_0 = arith.constant 0 : i32
    return %arg0, %c0_i32, %arg1 : i32, i32, i32
  }
}

</mosaic_0001>

<llo_original>
// kernel: tpu_custom_call.1
$region0: #{tpu_custom_call.1}
  #allocation0 [shape = 'u32[]', space=smem, size = 0x4, offset = 0x4, fixed_abs, tag = 'smem constant byte address 0x4 - core index']
  #allocation1 [shape = 'u32[144,128]{1,0:T(1,128)}', space=vmem, size = 0x12000, scoped, tag = 'internal scratch']
  %s0 = inlined_call_operand.hbm [shape: f32[2,64,256], index: 0, kind: input, shape index: {}]
  %s1 = inlined_call_operand.vmem [shape: f32[2,64,1], index: 1, kind: input, shape index: {}]
  %s2 = inlined_call_operand.vmem [shape: bf16[16,64], index: 2, kind: input, shape index: {}]
  %s3 = inlined_call_operand.vmem [shape: f32[16,1], index: 3, kind: input, shape index: {}]
  %s4 = inlined_call_operand.vmem [shape: bf16[64,16], index: 4, kind: input, shape index: {}]
  %s5 = inlined_call_operand.hbm [shape: bf16[2,64,256], index: 5, kind: output, shape index: {}]
  %s6 = sld [smem:[#allocation0]]
  $region57: #{tpu_custom_call.1} parent=0
    _
  %s8 = ssub.s32 1, %s6
  %s9 = scalar_select 0, %s8, %s6
  $region1: #{tpu_custom_call.1} parent=0
    #allocation2 [shape = 'u8[131072]{0}', space=vmem, size = 0x20000, scoped, tag = 'input window, operand 0']
    #allocation3 [shape = 's32[2]{0}', space=sflag, size = 0x8, scoped, tag = 'scoped memory for tpu_custom_call.1']
    #allocation4 [shape = 's32[2]{0}', space=sflag, size = 0x8, scoped, tag = 'scoped memory for tpu_custom_call.1']
    #allocation5 [shape = 'u8[65536]{0}', space=vmem, size = 0x10000, scoped, tag = 'output window, operand 0']
    %10 = vsyncpa [#allocation3], 0
    %s11 = scalar_lea.sflag [#allocation3], 1
    %12 = vsyncpa %s11, 0
    %13 = vsyncpa [#allocation4], 0
    %s14 = scalar_lea.sflag [#allocation4], 1
    %15 = vsyncpa %s14, 0
    loop: start=0, step=1, limit=4
    $region2: #{tpu_custom_call.1} parent=1 // loop_pre_header
      _
    $region3: #{tpu_custom_call.1} parent=1 // loop_header
      %s17 = sphi 0, %s21
      %p18 = scmp.ge.s32.totalorder %s17, 4
      %s24 = sphi 0, %s36
      %s25 = sphi 0, %s32
      %s26 = sphi 0, %s24
      %s27 = sphi 0, %s25
      %s28 = sphi 0, %s26
      %s29 = sphi 0, %s27
      %s41 = sphi 0, %s43
      %s44 = sphi 0, %s41
      %s45 = sphi 0, %s44
      %s61 = sphi 0, %s45
      %s67 = sphi 0, %s69
      %s70 = sphi 0, %s67
      %s71 = sphi 0, %s70
      %s87 = sphi 0, %s71
      %s91 = sphi 0, %s91
      %s93 = sphi 0, %s91
      %s94 = sphi 0, %s93
      %s108 = sphi 0, %s94
      %s112 = sphi 0, %s112
      %s114 = sphi 0, %s112
      %s115 = sphi 0, %s114
      %s129 = sphi 0, %s115
      %s133 = sphi 0, %s133
      %s135 = sphi 0, %s133
      %s136 = sphi 0, %s135
      %s150 = sphi 0, %s136
      %s158 = sphi 0, %s160
      %s161 = sphi 0, %s158
      %s162 = sphi 0, %s161
      %s178 = sphi 0, %s162
    $region4: #{tpu_custom_call.1} parent=1 // loop_header_branch
      %20 = sbr.rel (%p18) target = $region8
    $region5: #{tpu_custom_call.1} parent=1 // loop_body
      %s22 = ssub.s32 %s17, 1
      %s23 = ssub.s32 %s17, 2
      %s30 = sadd.s32 1, %s25
      %p31 = scmp.ge.s32.totalorder %s30, 1
      %s32 = scalar_select %p31, 0, %s30
      %s33 = sadd.s32 1, %s24
      %s34 = scalar_select %p31, %s33, %s24
      %p35 = scmp.ge.s32.totalorder %s34, 2
      %s36 = scalar_select %p35, 0, %s34
      %s37 = ssub.s32 %s24, %s36
      %s38 = ssub.s32 %s25, %s32
      %s39 = sor.u32 %s37, %s38
      %p40 = scmp.eq.s32.totalorder %s39, 0
      %s42 = sadd.s32 %s41, 1
      %s43 = scalar_select %p40, %s41, %s42
      %p46 = pneg %p40
      %p47 = scmp.eq.s32.totalorder %s17, 1
      %p48 = por %p46, %p47
      %p49 = scmp.ne.s32.totalorder %s41, %s44
      %p50 = scmp.eq.s32.totalorder %s17, 0
      %p51 = por %p49, %p50
      %p52 = scmp.ne.s32.totalorder %s41, %s44
      %p53 = scmp.eq.s32.totalorder %s22, 1
      %p54 = por %p52, %p53
      %p55 = scmp.ne.s32.totalorder %s44, %s45
      %p56 = scmp.eq.s32.totalorder %s22, 0
      %p57 = por %p55, %p56
      %p58 = scmp.ne.s32.totalorder %s44, %s45
      %p59 = scmp.eq.s32.totalorder %s23, 1
      %p60 = por %p58, %p59
      %p62 = scmp.ne.s32.totalorder %s45, %s61
      %p63 = scmp.eq.s32.totalorder %s23, 0
      %p64 = por %p62, %p63
      %s65 = ssub.s32 %s24, %s36
      %p66 = scmp.eq.s32.totalorder %s65, 0
      %s68 = sadd.s32 %s67, 1
      %s69 = scalar_select %p66, %s67, %s68
      %p72 = pneg %p66
      %p73 = scmp.eq.s32.totalorder %s17, 1
      %p74 = por %p72, %p73
      %p75 = scmp.ne.s32.totalorder %s67, %s70
      %p76 = scmp.eq.s32.totalorder %s17, 0
      %p77 = por %p75, %p76
      %p78 = scmp.ne.s32.totalorder %s67, %s70
      %p79 = scmp.eq.s32.totalorder %s22, 1
      %p80 = por %p78, %p79
      %p81 = scmp.ne.s32.totalorder %s70, %s71
      %p82 = scmp.eq.s32.totalorder %s22, 0
      %p83 = por %p81, %p82
      %p84 = scmp.ne.s32.totalorder %s70, %s71
      %p85 = scmp.eq.s32.totalorder %s23, 1
      %p86 = por %p84, %p85
      %p88 = scmp.ne.s32.totalorder %s71, %s87
      %p89 = scmp.eq.s32.totalorder %s23, 0
      %p90 = por %p88, %p89
      %s92 = sadd.s32 %s91, 1
      %p95 = scmp.eq.s32.totalorder %s17, 1
      %p96 = scmp.ne.s32.totalorder %s91, %s93
      %p97 = scmp.eq.s32.totalorder %s17, 0
      %p98 = por %p96, %p97
      %p99 = scmp.ne.s32.totalorder %s91, %s93
      %p100 = scmp.eq.s32.totalorder %s22, 1
      %p101 = por %p99, %p100
      %p102 = scmp.ne.s32.totalorder %s93, %s94
      %p103 = scmp.eq.s32.totalorder %s22, 0
      %p104 = por %p102, %p103
      %p105 = scmp.ne.s32.totalorder %s93, %s94
      %p106 = scmp.eq.s32.totalorder %s23, 1
      %p107 = por %p105, %p106
      %p109 = scmp.ne.s32.totalorder %s94, %s108
      %p110 = scmp.eq.s32.totalorder %s23, 0
      %p111 = por %p109, %p110
      %s113 = sadd.s32 %s112, 1
      %p116 = scmp.eq.s32.totalorder %s17, 1
      %p117 = scmp.ne.s32.totalorder %s112, %s114
      %p118 = scmp.eq.s32.totalorder %s17, 0
      %p119 = por %p117, %p118
      %p120 = scmp.ne.s32.totalorder %s112, %s114
      %p121 = scmp.eq.s32.totalorder %s22, 1
      %p122 = por %p120, %p121
      %p123 = scmp.ne.s32.totalorder %s114, %s115
      %p124 = scmp.eq.s32.totalorder %s22, 0
      %p125 = por %p123, %p124
      %p126 = scmp.ne.s32.totalorder %s114, %s115
      %p127 = scmp.eq.s32.totalorder %s23, 1
      %p128 = por %p126, %p127
      %p130 = scmp.ne.s32.totalorder %s115, %s129
      %p131 = scmp.eq.s32.totalorder %s23, 0
      %p132 = por %p130, %p131
      %s134 = sadd.s32 %s133, 1
      %p137 = scmp.eq.s32.totalorder %s17, 1
      %p138 = scmp.ne.s32.totalorder %s133, %s135
      %p139 = scmp.eq.s32.totalorder %s17, 0
      %p140 = por %p138, %p139
      %p141 = scmp.ne.s32.totalorder %s133, %s135
      %p142 = scmp.eq.s32.totalorder %s22, 1
      %p143 = por %p141, %p142
      %p144 = scmp.ne.s32.totalorder %s135, %s136
      %p145 = scmp.eq.s32.totalorder %s22, 0
      %p146 = por %p144, %p145
      %p147 = scmp.ne.s32.totalorder %s135, %s136
      %p148 = scmp.eq.s32.totalorder %s23, 1
      %p149 = por %p147, %p148
      %p151 = scmp.ne.s32.totalorder %s136, %s150
      %p152 = scmp.eq.s32.totalorder %s23, 0
      %p153 = por %p151, %p152
      %s154 = ssub.s32 %s24, %s36
      %s155 = ssub.s32 %s25, %s32
      %s156 = sor.u32 %s154, %s155
      %p157 = scmp.eq.s32.totalorder %s156, 0
      %s159 = sadd.s32 %s158, 1
      %s160 = scalar_select %p157, %s158, %s159
      %p163 = pneg %p157
      %p164 = scmp.eq.s32.totalorder %s17, 1
      %p165 = por %p163, %p164
      %p166 = scmp.ne.s32.totalorder %s158, %s161
      %p167 = scmp.eq.s32.totalorder %s17, 0
      %p168 = por %p166, %p167
      %p169 = scmp.ne.s32.totalorder %s158, %s161
      %p170 = scmp.eq.s32.totalorder %s22, 1
      %p171 = por %p169, %p170
      %p172 = scmp.ne.s32.totalorder %s161, %s162
      %p173 = scmp.eq.s32.totalorder %s22, 0
      %p174 = por %p172, %p173
      %p175 = scmp.ne.s32.totalorder %s161, %s162
      %p176 = scmp.eq.s32.totalorder %s23, 1
      %p177 = por %p175, %p176
      %p179 = scmp.ne.s32.totalorder %s162, %s178
      %p180 = scmp.eq.s32.totalorder %s23, 0
      %p181 = por %p179, %p180
      %p182 = scmp.le.s32.totalorder 1, %s17
      %p183 = scmp.lt.s32.totalorder %s17, 3
      %p184 = pnand %p182, %p183
      %p185 = pneg %p184
      // Predicated region
      $region9: #{tpu_custom_call.1} parent=5 // pred_check
        _
      $region10: #{tpu_custom_call.1} parent=5 // pred_check_branch
        %187 = sbr.rel (%p184) target = $region12
      $region11: #{tpu_custom_call.1} parent=5 // pred_region
        %s188 = ssub.s32 %s17, 1
        // Predicated region
        $region13: #{tpu_custom_call.1} parent=11 // pred_check
          %p189 = pneg %p104
        $region14: #{tpu_custom_call.1} parent=11 // pred_check_branch
          %191 = sbr.rel (%p189) target = $region16
        $region15: #{tpu_custom_call.1} parent=11 // pred_region
          _
        $region16: #{tpu_custom_call.1} parent=11 // pred_fallthru
          _
        // Predicated region
        $region17: #{tpu_custom_call.1} parent=11 // pred_check
          %p192 = pneg %p125
        $region18: #{tpu_custom_call.1} parent=11 // pred_check_branch
          %194 = sbr.rel (%p192) target = $region20
        $region19: #{tpu_custom_call.1} parent=11 // pred_region
          _
        $region20: #{tpu_custom_call.1} parent=11 // pred_fallthru
          _
        // Predicated region
        $region21: #{tpu_custom_call.1} parent=11 // pred_check
          %p195 = pneg %p146
        $region22: #{tpu_custom_call.1} parent=11 // pred_check_branch
          %197 = sbr.rel (%p195) target = $region24
        $region23: #{tpu_custom_call.1} parent=11 // pred_region
          _
        $region24: #{tpu_custom_call.1} parent=11 // pred_fallthru
          _
      $region12: #{tpu_custom_call.1} parent=5 // pred_fallthru
        _
      %p198 = scmp.lt.s32.totalorder %s17, 2
      // Predicated region
      $region25: #{tpu_custom_call.1} parent=5 // pred_check
        %p199 = pneg %p198
      $region26: #{tpu_custom_call.1} parent=5 // pred_check_branch
        %201 = sbr.rel (%p199) target = $region28
      $region27: #{tpu_custom_call.1} parent=5 // pred_region
        // Predicated region
        $region29: #{tpu_custom_call.1} parent=27 // pred_check
          %p202 = pneg %p51
        $region30: #{tpu_custom_call.1} parent=27 // pred_check_branch
          %204 = sbr.rel (%p202) target = $region32
        $region31: #{tpu_custom_call.1} parent=27 // pred_region
          %s205 = sand.u32 %s41, 1
          %s206 = scalar_lea.sflag [#allocation3], %s205
          %s207 = sand.u32 %s41, 1
          %s208 = smul.addr %s207, 128
          %s209 = scalar_lea.vmem [#allocation2], %s208
          %s210 = smul.u32 2, %s25
          %s212 = ssub.s32 2048, 2048
          %213 = vsyncadd %s206, %s212
          %s214 = smul.addr %s24, 16
          %s215 = sadd.s32 %s210, %s214
          %s216 = smul.addr %s215, 128
          %s217 = scalar_lea.hbm %s0, %s216
          %s218 = sshll.u32 %s209, 4
          %s219 = int_to_ptr.vmem [resolvable:$true] %s218
          %224 = dma.hbm_to_vmem [thread:$0]  %s217, 2048, %s219, %s206, 256, 256, 16
        $region32: #{tpu_custom_call.1} parent=27 // pred_fallthru
          _
        // Predicated region
        $region33: #{tpu_custom_call.1} parent=27 // pred_check
          %p225 = pneg %p77
        $region34: #{tpu_custom_call.1} parent=27 // pred_check_branch
          %227 = sbr.rel (%p225) target = $region36
        $region35: #{tpu_custom_call.1} parent=27 // pred_region
          %p228 = scmp.lt.s32.totalorder %s24, 1
          %s229 = scalar_select %p228, %s24, 1
          %s230 = smul.addr %s229, 8
          %s231 = smul.addr %s230, 8
          %s232 = scalar_lea.vmem %s1, %s231
        $region36: #{tpu_custom_call.1} parent=27 // pred_fallthru
          _
      $region28: #{tpu_custom_call.1} parent=5 // pred_fallthru
        _
      %p233 = scmp.le.s32.totalorder 1, %s17
      %p234 = scmp.lt.s32.totalorder %s17, 3
      %p235 = pnand %p233, %p234
      %p236 = pneg %p235
      // Predicated region
      $region37: #{tpu_custom_call.1} parent=5 // pred_check
        _
      $region38: #{tpu_custom_call.1} parent=5 // pred_check_branch
        %238 = sbr.rel (%p235) target = $region40
      $region39: #{tpu_custom_call.1} parent=5 // pred_region
        %s239 = ssub.s32 %s17, 1
        %s240 = sand.u32 %s44, 1
        %s241 = scalar_lea.sflag [#allocation3], %s240
        %s242 = sand.u32 %s44, 1
        %s243 = smul.addr %s242, 128
        %s244 = scalar_lea.vmem [#allocation2], %s243
        // Predicated region
        $region41: #{tpu_custom_call.1} parent=39 // pred_check
          %p245 = pneg %p57
        $region42: #{tpu_custom_call.1} parent=39 // pred_check_branch
          %247 = sbr.rel (%p245) target = $region44
        $region43: #{tpu_custom_call.1} parent=39 // pred_region
          %248 = dma.done %s241, 2048
        $region44: #{tpu_custom_call.1} parent=39 // pred_fallthru
          _
        %s249 = sand.u32 %s44, 1
        %s250 = scalar_lea.sflag [#allocation3], %s249
        %s251 = sand.u32 %s44, 1
        %s252 = smul.addr %s251, 128
        %s253 = scalar_lea.vmem [#allocation2], %s252
        %p254 = pneg %p57
        %p255 = pneg %p54
        %p256 = scmp.lt.s32.totalorder %s26, 1
        %s257 = scalar_select %p256, %s26, 1
        %s258 = smul.addr %s257, 8
        %s259 = smul.addr %s258, 8
        %s260 = scalar_lea.vmem %s1, %s259
        %p261 = pneg %p83
        %p262 = pneg %p80
        %p263 = pneg %p104
        %p264 = pneg %p101
        %p265 = pneg %p125
        %p266 = pneg %p122
        %p267 = pneg %p146
        %p268 = pneg %p143
        %p269 = pneg %p174
        %p270 = pneg %p171
        %s271 = sand.u32 %s161, 1
        %s272 = scalar_lea.sflag [#allocation4], %s271
        %s273 = sand.u32 %s161, 1
        %s274 = smul.addr %s273, 64
        %s275 = scalar_lea.vmem [#allocation5], %s274
        %s276 = smul.u32 2, %s27
        %p277 = scmp.lt.s32.totalorder %s26, 1
        %s278 = scalar_select %p277, %s26, 1
        %s279 = smul.addr %s278, 8
        %s280 = smul.addr %s279, 8
        %s281 = scalar_lea.vmem %s1, %s280
        %s282 = smul.u32 2, %s27
        %v284 = vld [vmem:[%s244] sm:$0xff]
        %v285 = vld [vmem:[%s244 + $0x8] sm:$0xff]
        %v286 = vld [vmem:[%s244 + $0x10] sm:$0xff]
        %v287 = vld [vmem:[%s244 + $0x18] sm:$0xff]
        %v288 = vld [vmem:[%s244 + $0x20] sm:$0xff]
        %v289 = vld [vmem:[%s244 + $0x28] sm:$0xff]
        %v290 = vld [vmem:[%s244 + $0x30] sm:$0xff]
        %v291 = vld [vmem:[%s244 + $0x38] sm:$0xff]
        %v292 = vld [vmem:[%s244 + $0x40] sm:$0xff]
        %v293 = vld [vmem:[%s244 + $0x48] sm:$0xff]
        %v294 = vld [vmem:[%s244 + $0x50] sm:$0xff]
        %v295 = vld [vmem:[%s244 + $0x58] sm:$0xff]
        %v296 = vld [vmem:[%s244 + $0x60] sm:$0xff]
        %v297 = vld [vmem:[%s244 + $0x68] sm:$0xff]
        %v298 = vld [vmem:[%s244 + $0x70] sm:$0xff]
        %v299 = vld [vmem:[%s244 + $0x78] sm:$0xff]
        %v300 = vpack.c.bf16 %v286, %v284
        %v301 = vpack.c.bf16 %v287, %v285
        %v302 = vpack.c.bf16 %v290, %v288
        %v303 = vpack.c.bf16 %v291, %v289
        %v304 = vpack.c.bf16 %v294, %v292
        %v305 = vpack.c.bf16 %v295, %v293
        %v306 = vpack.c.bf16 %v298, %v296
        %v307 = vpack.c.bf16 %v299, %v297
        %v308 = vld [vmem:[%s2] sm:$0xf]
        %v309 = vld [vmem:[%s2 + $0x4] sm:$0xf]
        %v310 = vld [vmem:[%s3] sm:$0xff]
        %v311 = vld [vmem:[%s3 + $0x8] sm:$0xff]
        %313 = vset.pattern.permute.xlu0 0
        %314 = vperm.xlu0 %313, %v310
        %v315 = vpop.permute.xlu0 %314
        %318 = vset.pattern.permute.xlu0 0
        %319 = vperm.xlu0 %318, %v311
        %v320 = vpop.permute.xlu0 %319
        %v324 = vunpack.c.l.b16 %v308
        %v325 = vunpack.c.l.b16 %v309
        %v326 = vpack.c.b16 %v325, %v324
        %vm327 = vcmask 523264
        %v329 = vsel %vm327, %v326, 0
        %331 = vmatprep.subr.bf16.mxu0 %v301
        %332 = vmatpush1.bf16.msra.mxu0 %v300
        %333 = vmatprep.subr.bf16.mxu0 %v303
        %334 = vmatpush1.bf16.msra.mxu0 %v302
        %335 = vmatprep.subr.bf16.mxu0 %v305
        %336 = vmatpush1.bf16.msra.mxu0 %v304
        %337 = vmatprep.subr.bf16.mxu0 %v307
        %338 = vmatpush1.bf16.msra.mxu0 %v306
        %339 = vmatprep.subr.bf16.mxu0 0
        %340 = vmatpush1.bf16.msra.mxu0 0
        %341 = vmatprep.subr.bf16.mxu0 0
        %342 = vmatpush1.bf16.msra.mxu0 0
        %343 = vmatprep.subr.bf16.mxu0 0
        %344 = vmatpush1.bf16.msra.mxu0 0
        %345 = vmatprep.subr.bf16.mxu0 0
        %346 = vmatpush1.bf16.msra.mxu0 0
        %347 = vmatprep.subr.bf16.mxu0 0
        %348 = vmatpush1.bf16.msra.mxu0 0
        %349 = vmatprep.subr.bf16.mxu0 0
        %350 = vmatpush1.bf16.msra.mxu0 0
        %351 = vmatprep.subr.bf16.mxu0 0
        %352 = vmatpush1.bf16.msra.mxu0 0
        %353 = vmatprep.subr.bf16.mxu0 0
        %354 = vmatpush1.bf16.msra.mxu0 0
        %355 = vmatprep.subr.bf16.mxu0 0
        %356 = vmatpush1.bf16.msra.mxu0 0
        %357 = vmatprep.subr.bf16.mxu0 0
        %358 = vmatpush1.bf16.msra.mxu0 0
        %359 = vmatprep.subr.bf16.mxu0 0
        %360 = vmatpush1.bf16.msra.mxu0 0
        %361 = vmatprep.subr.bf16.mxu0 0
        %362 = vmatpush1.bf16.msra.mxu0 0
        %363 = vmatprep.mubr.bf16.mxu0 0
        %364 = vmatmul.mubr.bf16.gmra.mrb[0].mxu0 %v329
        %v365 = vpop.f32.mrb[0].mxu0
        %v366 = vadd.f32 %v315, %v365
        %v367 = vpop.f32.mrb[0].mxu0
        %v368 = vadd.f32 %v315, %v367
        %v369 = vpop.f32.mrb[0].mxu0
        %v370 = vadd.f32 %v320, %v369
        %v371 = vpop.f32.mrb[0].mxu0
        %v372 = vadd.f32 %v320, %v371
        %373 = vdwg.mxu0
        %v374 = vmax.f32 %v366, 0.0
        %v375 = vmax.f32 %v368, 0.0
        %v376 = vmax.f32 %v370, 0.0
        %v377 = vmax.f32 %v372, 0.0
        %v378 = vld [vmem:[%s4] sm:$0xf]
        %v379 = vld [vmem:[%s4 + $0x4] sm:$0xf]
        %v380 = vld [vmem:[%s4 + $0x8] sm:$0xf]
        %v381 = vld [vmem:[%s4 + $0xc] sm:$0xf]
        %v382 = vld [vmem:[%s4 + $0x10] sm:$0xf]
        %v383 = vld [vmem:[%s4 + $0x14] sm:$0xf]
        %v384 = vld [vmem:[%s4 + $0x18] sm:$0xf]
        %v385 = vld [vmem:[%s4 + $0x1c] sm:$0xf]
        %v386 = vpack.c.bf16 %v376, %v374
        %v387 = vpack.c.bf16 %v377, %v375
        %v388 = vld [vmem:[%s281] sm:$0xff]
        %v389 = vld [vmem:[%s281 + $0x8] sm:$0xff]
        %v390 = vld [vmem:[%s281 + $0x10] sm:$0xff]
        %v391 = vld [vmem:[%s281 + $0x18] sm:$0xff]
        %v392 = vld [vmem:[%s281 + $0x20] sm:$0xff]
        %v393 = vld [vmem:[%s281 + $0x28] sm:$0xff]
        %v394 = vld [vmem:[%s281 + $0x30] sm:$0xff]
        %v395 = vld [vmem:[%s281 + $0x38] sm:$0xff]
        %397 = vset.pattern.permute.xlu0 0
        %398 = vperm.xlu0 %397, %v388
        %v399 = vpop.permute.xlu0 %398
        %402 = vset.pattern.permute.xlu0 0
        %403 = vperm.xlu0 %402, %v389
        %v404 = vpop.permute.xlu0 %403
        %407 = vset.pattern.permute.xlu0 0
        %408 = vperm.xlu0 %407, %v390
        %v409 = vpop.permute.xlu0 %408
        %412 = vset.pattern.permute.xlu0 0
        %413 = vperm.xlu0 %412, %v391
        %v414 = vpop.permute.xlu0 %413
        %417 = vset.pattern.permute.xlu0 0
        %418 = vperm.xlu0 %417, %v392
        %v419 = vpop.permute.xlu0 %418
        %422 = vset.pattern.permute.xlu0 0
        %423 = vperm.xlu0 %422, %v393
        %v424 = vpop.permute.xlu0 %423
        %427 = vset.pattern.permute.xlu0 0
        %428 = vperm.xlu0 %427, %v394
        %v429 = vpop.permute.xlu0 %428
        %432 = vset.pattern.permute.xlu0 0
        %433 = vperm.xlu0 %432, %v395
        %v434 = vpop.permute.xlu0 %433
        %v444 = vunpack.c.l.b16 %v378
        %v445 = vunpack.c.l.b16 %v379
        %v446 = vunpack.c.l.b16 %v380
        %v447 = vunpack.c.l.b16 %v381
        %v448 = vunpack.c.l.b16 %v382
        %v449 = vunpack.c.l.b16 %v383
        %v450 = vunpack.c.l.b16 %v384
        %v451 = vunpack.c.l.b16 %v385
        %v452 = vpack.c.b16 %v445, %v444
        %v453 = vpack.c.b16 %v447, %v446
        %v454 = vpack.c.b16 %v449, %v448
        %v455 = vpack.c.b16 %v451, %v450
        %vm456 = vcmask 130048
        %v458 = vsel %vm456, %v452, 0
        %v461 = vsel %vm456, %v453, 0
        %v464 = vsel %vm456, %v454, 0
        %v467 = vsel %vm456, %v455, 0
        %469 = vmatprep.subr.bf16.mxu0 %v387
        %470 = vmatpush1.bf16.msra.mxu0 %v386
        %471 = vmatprep.subr.bf16.mxu0 0
        %472 = vmatpush1.bf16.msra.mxu0 0
        %473 = vmatprep.subr.bf16.mxu0 0
        %474 = vmatpush1.bf16.msra.mxu0 0
        %475 = vmatprep.subr.bf16.mxu0 0
        %476 = vmatpush1.bf16.msra.mxu0 0
        %477 = vmatprep.subr.bf16.mxu0 0
        %478 = vmatpush1.bf16.msra.mxu0 0
        %479 = vmatprep.subr.bf16.mxu0 0
        %480 = vmatpush1.bf16.msra.mxu0 0
        %481 = vmatprep.subr.bf16.mxu0 0
        %482 = vmatpush1.bf16.msra.mxu0 0
        %483 = vmatprep.subr.bf16.mxu0 0
        %484 = vmatpush1.bf16.msra.mxu0 0
        %485 = vmatprep.subr.bf16.mxu0 0
        %486 = vmatpush1.bf16.msra.mxu0 0
        %487 = vmatprep.subr.bf16.mxu0 0
        %488 = vmatpush1.bf16.msra.mxu0 0
        %489 = vmatprep.subr.bf16.mxu0 0
        %490 = vmatpush1.bf16.msra.mxu0 0
        %491 = vmatprep.subr.bf16.mxu0 0
        %492 = vmatpush1.bf16.msra.mxu0 0
        %493 = vmatprep.subr.bf16.mxu0 0
        %494 = vmatpush1.bf16.msra.mxu0 0
        %495 = vmatprep.subr.bf16.mxu0 0
        %496 = vmatpush1.bf16.msra.mxu0 0
        %497 = vmatprep.subr.bf16.mxu0 0
        %498 = vmatpush1.bf16.msra.mxu0 0
        %499 = vmatprep.subr.bf16.mxu0 0
        %500 = vmatpush1.bf16.msra.mxu0 0
        %501 = vmatprep.mubr.bf16.mxu0 0
        %502 = vmatmul.mubr.bf16.gmra.mrb[0].mxu0 %v458
        %v503 = vpop.f32.mrb[0].mxu0
        %v504 = vadd.f32 %v399, %v503
        %v505 = vpop.f32.mrb[0].mxu0
        %v506 = vadd.f32 %v399, %v505
        %v507 = vpop.f32.mrb[0].mxu0
        %v508 = vadd.f32 %v404, %v507
        %v509 = vpop.f32.mrb[0].mxu0
        %v510 = vadd.f32 %v404, %v509
        %511 = vmatprep.mubr.bf16.mxu0 0
        %512 = vmatmul.mubr.bf16.gmra.mrb[0].mxu0 %v461
        %v513 = vpop.f32.mrb[0].mxu0
        %v514 = vadd.f32 %v409, %v513
        %v515 = vpop.f32.mrb[0].mxu0
        %v516 = vadd.f32 %v409, %v515
        %v517 = vpop.f32.mrb[0].mxu0
        %v518 = vadd.f32 %v414, %v517
        %v519 = vpop.f32.mrb[0].mxu0
        %v520 = vadd.f32 %v414, %v519
        %521 = vmatprep.mubr.bf16.mxu0 0
        %522 = vmatmul.mubr.bf16.gmra.mrb[0].mxu0 %v464
        %v523 = vpop.f32.mrb[0].mxu0
        %v524 = vadd.f32 %v419, %v523
        %v525 = vpop.f32.mrb[0].mxu0
        %v526 = vadd.f32 %v419, %v525
        %v527 = vpop.f32.mrb[0].mxu0
        %v528 = vadd.f32 %v424, %v527
        %v529 = vpop.f32.mrb[0].mxu0
        %v530 = vadd.f32 %v424, %v529
        %531 = vmatprep.mubr.bf16.mxu0 0
        %532 = vmatmul.mubr.bf16.gmra.mrb[0].mxu0 %v467
        %v533 = vpop.f32.mrb[0].mxu0
        %v534 = vadd.f32 %v429, %v533
        %v535 = vpop.f32.mrb[0].mxu0
        %v536 = vadd.f32 %v429, %v535
        %v537 = vpop.f32.mrb[0].mxu0
        %v538 = vadd.f32 %v434, %v537
        %v539 = vpop.f32.mrb[0].mxu0
        %v540 = vadd.f32 %v434, %v539
        %541 = vdwg.mxu0
        %v542 = vsub.f32 0.0, %v504
        %v543 = vsub.f32 0.0, %v506
        %v544 = vsub.f32 0.0, %v508
        %v545 = vsub.f32 0.0, %v510
        %v546 = vsub.f32 0.0, %v514
        %v547 = vsub.f32 0.0, %v516
        %v548 = vsub.f32 0.0, %v518
        %v549 = vsub.f32 0.0, %v520
        %v550 = vsub.f32 0.0, %v524
        %v551 = vsub.f32 0.0, %v526
        %v552 = vsub.f32 0.0, %v528
        %v553 = vsub.f32 0.0, %v530
        %v554 = vsub.f32 0.0, %v534
        %v555 = vsub.f32 0.0, %v536
        %v556 = vsub.f32 0.0, %v538
        %v557 = vsub.f32 0.0, %v540
        %v558 = vmul.f32 %v542, 1.442695
        %v559 = vpow.pop %v558
        %v560 = vmul.f32 %v543, 1.442695
        %v561 = vpow.pop %v560
        %v562 = vmul.f32 %v544, 1.442695
        %v563 = vpow.pop %v562
        %v564 = vmul.f32 %v545, 1.442695
        %v565 = vpow.pop %v564
        %v566 = vmul.f32 %v546, 1.442695
        %v567 = vpow.pop %v566
        %v568 = vmul.f32 %v547, 1.442695
        %v569 = vpow.pop %v568
        %v570 = vmul.f32 %v548, 1.442695
        %v571 = vpow.pop %v570
        %v572 = vmul.f32 %v549, 1.442695
        %v573 = vpow.pop %v572
        %v574 = vmul.f32 %v550, 1.442695
        %v575 = vpow.pop %v574
        %v576 = vmul.f32 %v551, 1.442695
        %v577 = vpow.pop %v576
        %v578 = vmul.f32 %v552, 1.442695
        %v579 = vpow.pop %v578
        %v580 = vmul.f32 %v553, 1.442695
        %v581 = vpow.pop %v580
        %v582 = vmul.f32 %v554, 1.442695
        %v583 = vpow.pop %v582
        %v584 = vmul.f32 %v555, 1.442695
        %v585 = vpow.pop %v584
        %v586 = vmul.f32 %v556, 1.442695
        %v587 = vpow.pop %v586
        %v588 = vmul.f32 %v557, 1.442695
        %v589 = vpow.pop %v588
        %v590 = vadd.f32 %v559, 1.0
        %v591 = vadd.f32 %v561, 1.0
        %v592 = vadd.f32 %v563, 1.0
        %v593 = vadd.f32 %v565, 1.0
        %v594 = vadd.f32 %v567, 1.0
        %v595 = vadd.f32 %v569, 1.0
        %v596 = vadd.f32 %v571, 1.0
        %v597 = vadd.f32 %v573, 1.0
        %v598 = vadd.f32 %v575, 1.0
        %v599 = vadd.f32 %v577, 1.0
        %v600 = vadd.f32 %v579, 1.0
        %v601 = vadd.f32 %v581, 1.0
        %v602 = vadd.f32 %v583, 1.0
        %v603 = vadd.f32 %v585, 1.0
        %v604 = vadd.f32 %v587, 1.0
        %v605 = vadd.f32 %v589, 1.0
        %v606 = vrcp.pop %v590
        %v607 = vrcp.pop %v591
        %v608 = vrcp.pop %v592
        %v609 = vrcp.pop %v593
        %v610 = vrcp.pop %v594
        %v611 = vrcp.pop %v595
        %v612 = vrcp.pop %v596
        %v613 = vrcp.pop %v597
        %v614 = vrcp.pop %v598
        %v615 = vrcp.pop %v599
        %v616 = vrcp.pop %v600
        %v617 = vrcp.pop %v601
        %v618 = vrcp.pop %v602
        %v619 = vrcp.pop %v603
        %v620 = vrcp.pop %v604
        %v621 = vrcp.pop %v605
        %v622 = vpack.c.bf16 %v608, %v606
        %v623 = vpack.c.bf16 %v609, %v607
        %v624 = vpack.c.bf16 %v612, %v610
        %v625 = vpack.c.bf16 %v613, %v611
        %v626 = vpack.c.bf16 %v616, %v614
        %v627 = vpack.c.bf16 %v617, %v615
        %v628 = vpack.c.bf16 %v620, %v618
        %v629 = vpack.c.bf16 %v621, %v619
        %v638 = vunpack.c.l.b16 %v622
        %v639 = vunpack.c.l.b16 %v623
        %v640 = vunpack.c.h.b16 %v622
        %v641 = vunpack.c.h.b16 %v623
        %v642 = vunpack.c.l.b16 %v624
        %v643 = vunpack.c.l.b16 %v625
        %v644 = vunpack.c.h.b16 %v624
        %v645 = vunpack.c.h.b16 %v625
        %v646 = vunpack.c.l.b16 %v626
        %v647 = vunpack.c.l.b16 %v627
        %v648 = vunpack.c.h.b16 %v626
        %v649 = vunpack.c.h.b16 %v627
        %v650 = vunpack.c.l.b16 %v628
        %v651 = vunpack.c.l.b16 %v629
        %v652 = vunpack.c.h.b16 %v628
        %v653 = vunpack.c.h.b16 %v629
        %v654 = vpack.c.b16 %v639, %v638
        %v655 = vpack.c.b16 %v641, %v640
        %v656 = vpack.c.b16 %v643, %v642
        %v657 = vpack.c.b16 %v645, %v644
        %v658 = vpack.c.b16 %v647, %v646
        %v659 = vpack.c.b16 %v649, %v648
        %v660 = vpack.c.b16 %v651, %v650
        %v661 = vpack.c.b16 %v653, %v652
        %670 = vst [vmem:[%s275] sm:$0xff] %v654
        %671 = vst [vmem:[%s275 + $0x8] sm:$0xff] %v655
        %672 = vst [vmem:[%s275 + $0x10] sm:$0xff] %v656
        %673 = vst [vmem:[%s275 + $0x18] sm:$0xff] %v657
        %674 = vst [vmem:[%s275 + $0x20] sm:$0xff] %v658
        %675 = vst [vmem:[%s275 + $0x28] sm:$0xff] %v659
        %676 = vst [vmem:[%s275 + $0x30] sm:$0xff] %v660
        %677 = vst [vmem:[%s275 + $0x38] sm:$0xff] %v661
        %s678 = sand.u32 %s161, 1
        %s679 = scalar_lea.sflag [#allocation4], %s678
        %s680 = sand.u32 %s161, 1
        %s681 = smul.addr %s680, 64
        %s682 = scalar_lea.vmem [#allocation5], %s681
        // Predicated region
        $region45: #{tpu_custom_call.1} parent=39 // pred_check
          %p683 = pneg %p171
        $region46: #{tpu_custom_call.1} parent=39 // pred_check_branch
          %685 = sbr.rel (%p683) target = $region48
        $region47: #{tpu_custom_call.1} parent=39 // pred_region
          %s686 = smul.u32 2, %s27
          %s688 = ssub.s32 1024, 1024
          %689 = vsyncadd %s679, %s688
          %s690 = smul.addr %s26, 16
          %s691 = sadd.s32 %s686, %s690
          %s692 = smul.addr %s691, 64
          %s693 = scalar_lea.hbm %s5, %s692
          %s694 = sshll.u32 %s682, 4
          %s695 = int_to_ptr.vmem [resolvable:$true] %s694
          %700 = dma.vmem_to_hbm [thread:$0]  %s695, 1024, %s693, %s679, 128, 128, 8
        $region48: #{tpu_custom_call.1} parent=39 // pred_fallthru
          _
      $region40: #{tpu_custom_call.1} parent=5 // pred_fallthru
        _
      %p701 = scmp.le.s32.totalorder 2, %s17
      // Predicated region
      $region49: #{tpu_custom_call.1} parent=5 // pred_check
        %p702 = pneg %p701
      $region50: #{tpu_custom_call.1} parent=5 // pred_check_branch
        %704 = sbr.rel (%p702) target = $region52
      $region51: #{tpu_custom_call.1} parent=5 // pred_region
        %s705 = ssub.s32 %s17, 2
        // Predicated region
        $region53: #{tpu_custom_call.1} parent=51 // pred_check
          %p706 = pneg %p177
        $region54: #{tpu_custom_call.1} parent=51 // pred_check_branch
          %708 = sbr.rel (%p706) target = $region56
        $region55: #{tpu_custom_call.1} parent=51 // pred_region
          %s709 = sand.u32 %s162, 1
          %s710 = scalar_lea.sflag [#allocation4], %s709
          %s711 = sand.u32 %s162, 1
          %s712 = smul.addr %s711, 64
          %s713 = scalar_lea.vmem [#allocation5], %s712
          %714 = dma.done %s710, 1024
        $region56: #{tpu_custom_call.1} parent=51 // pred_fallthru
          _
      $region52: #{tpu_custom_call.1} parent=5 // pred_fallthru
        _
    $region6: #{tpu_custom_call.1} parent=1 // loop_footer
      %s21 = sadd.s32 1, %s17
    $region7: #{tpu_custom_call.1} parent=1 // loop_footer_branch
      %16 = sbr.rel target = $region3
    $region8: #{tpu_custom_call.1} parent=1 // loop_exit
      _
    %715 = vsyncpa [#allocation3], 1
    %s716 = scalar_lea.sflag [#allocation3], 1
    %717 = vsyncpa %s716, 1
    %718 = vsyncpa [#allocation4], 1
    %s719 = scalar_lea.sflag [#allocation4], 1
    %720 = vsyncpa %s719, 1

</llo_original>
